<compile_context>
chip_gen: v5e
topology: v5e:2x2
jax: 0.10.0
libtpu: 0.0.40
codegen_flags: <defaults>
</compile_context>

<pallas_src>
import math
import functools

import jax
import jax.numpy as jnp
from jax.experimental import pallas as pl
from jax.experimental.pallas import tpu as pltpu


# ---------------------------------------------------------------------------
# Pallas kernel 1: depthwise 3x3 conv (nn.Conv2d(dim, dim, 3, 1, 1, groups=dim))
# NHWC in, NHWC out, gridded over batch ("parallel" so v7x can split it).
# ---------------------------------------------------------------------------
def dwconv3x3_kernel(x_ref, w_ref, b_ref, o_ref):
    # x_ref: (1, H+2, W+2, C) zero-padded input block (NHWC)
    # w_ref: (3, 3, C) depthwise weights, b_ref: (1, 1, C) bias
    # o_ref: (1, H, W, C)
    H = o_ref.shape[1]
    W = o_ref.shape[2]
    x = x_ref[...].astype(jnp.float32)
    w = w_ref[...].astype(jnp.float32)
    acc = jnp.zeros(o_ref.shape, jnp.float32)
    # TODO(synk): with C < 128 the multiply-adds run at C/128 lane occupancy;
    # folding a chunk of W into the minor dim would densify lanes (~4x on the
    # conv's VPU work) at the cost of an in-kernel relayout.
    for dh in range(3):
        for dw in range(3):
            acc = acc + x[:, dh:dh + H, dw:dw + W, :] * w[dh, dw]
    acc = acc + b_ref[...].astype(jnp.float32)
    o_ref[...] = acc.astype(o_ref.dtype)


def depthwise_conv3x3_nhwc(x_nhwc, weight, bias):
    """x_nhwc: (B, H, W, C).  weight: (C, 1, 3, 3) PyTorch layout, bias: (C,)."""
    B, H, W, C = x_nhwc.shape
    # TODO(synk): the zero halo is still materialized in HBM by jnp.pad; it
    # could be folded into the kernel (edge masking / halo-aware index_map) to
    # save one HBM round trip of the conv input.
    x_pad = jnp.pad(x_nhwc, ((0, 0), (1, 1), (1, 1), (0, 0)))
    w_hwc = jnp.transpose(weight[:, 0, :, :], (1, 2, 0))      # (3, 3, C)
    b_r = bias.reshape(1, 1, C)
    return pl.pallas_call(
        dwconv3x3_kernel,
        out_shape=jax.ShapeDtypeStruct((B, H, W, C), x_nhwc.dtype),
        grid=(B,),
        in_specs=[
            pl.BlockSpec((1, H + 2, W + 2, C), lambda b: (b, 0, 0, 0)),
            pl.BlockSpec((3, 3, C), lambda b: (0, 0, 0)),
            pl.BlockSpec((1, 1, C), lambda b: (0, 0, 0)),
        ],
        out_specs=pl.BlockSpec((1, H, W, C), lambda b: (b, 0, 0, 0)),
        compiler_params=pltpu.CompilerParams(
            dimension_semantics=("parallel",)),
    )(x_pad, w_hwc, b_r)


# ---------------------------------------------------------------------------
# Pallas kernel 2: HS attention hot path, batched over (batch*head) groups.
#   score = scale * q @ k^T + rpe; L1-normalize along last dim; 1 - cos(.);
#   out = attn @ v + rpe           (rpe shared across batch & heads)
# Output is stored as a lane-dense (TBH, nWin, N*d) bf16 slab.
# ---------------------------------------------------------------------------
def hs_attn_rpe_kernel(q_ref, k_ref, v_ref, rpe_ref, o_ref, *, scale):
    TBH, nWin, N, d = q_ref.shape
    G = TBH * nWin
    # Leading-dim collapse only; minor (N, d) dims untouched -> no relayout.
    q = q_ref[...].reshape(G, N, d)           # bf16
    k = k_ref[...].reshape(G, N, d)           # bf16
    v = v_ref[...].reshape(G, N, d)           # bf16
    rpe = rpe_ref[...].astype(jnp.float32)    # (nWin, N, N)

    # bf16 MXU operands, f32 accumulation; scale folded in after the matmul.
    score = jnp.einsum('gnd,gmd->gnm', q, k,
                       preferred_element_type=jnp.float32) * scale
    # Per-window RPE broadcast over the batch*head axis (no (G,N,N) copy in HBM).
    score = score.reshape(TBH, nWin, N, N) + rpe[None]
    score = score.reshape(G, N, N)

    # L1 normalization + cosine map, in f32 on the VPU/EUP.
    # TODO(synk): with N=16 this stage runs at 16/128 lane occupancy; packing 8
    # groups along lanes (pack -> segmented reduce -> unpack) would densify the
    # vregs, but the benefit depends on Mosaic keeping the packed layout through
    # the segmented reduction, so it is left un-applied here.
    norm = jnp.sum(jnp.abs(score), axis=-1, keepdims=True)
    # Divide moved to the EUP slot (approx reciprocal) — VALU stays free.
    attn_l1 = score * pl.reciprocal(norm + 1e-8, approx=True)
    attn = 1.0 - jnp.cos(attn_l1 * (math.pi / 2.0))
    # NOTE: reference's idx==1 factor sin(pi/2)^2 == 1.0 exactly -> dropped.

    out = jnp.einsum('gnm,gmd->gnd', attn.astype(v.dtype), v,
                     preferred_element_type=jnp.float32)
    out = out.reshape(TBH, nWin, N, d) + rpe[None]   # requires d == N (reference)
    # Lane-dense store: last dim N*d is a multiple of 128 -> unmasked vst's.
    o_ref[...] = out.reshape(TBH, nWin, N * d).astype(o_ref.dtype)


def hs_attn_plain_kernel(q_ref, k_ref, v_ref, o_ref, *, scale):
    # idx == -1: plain scaled dot-product, no rpe stream, no "+ rpe".
    TBH, nWin, N, d = q_ref.shape
    G = TBH * nWin
    q = q_ref[...].reshape(G, N, d)
    k = k_ref[...].reshape(G, N, d)
    v = v_ref[...].reshape(G, N, d)
    attn = jnp.einsum('gnd,gmd->gnm', q, k,
                      preferred_element_type=jnp.float32) * scale
    out = jnp.einsum('gnm,gmd->gnd', attn.astype(v.dtype), v,
                     preferred_element_type=jnp.float32)
    o_ref[...] = out.reshape(TBH, nWin, N * d).astype(o_ref.dtype)


def _group_bytes(nWin, N, d):
    """Per-(batch*head)-group VMEM footprint estimate for one grid step."""
    io = 3 * nWin * N * d * 2            # q, k, v bf16 blocks
    out = nWin * N * d * 2               # bf16 lane-dense output slab
    pipelined = 2 * (io + out)           # Pallas double-buffers each stream
    # In-kernel f32 intermediates: score/attn are lane-padded to 128 when
    # N < 128; the f32 pre-store accumulator is lane-padded to 128 when d < 128.
    scratch = nWin * N * max(N, 128) * 4 * 3 + nWin * N * max(d, 128) * 4
    return pipelined + scratch


# Per-step VMEM budget for the attention kernel.  Kept well under the v7x
# physical 64 MiB (and under the raised scoped limit below) so the same tiling
# is safe on v5e / v6e / v7x.
_ATTN_VMEM_BUDGET = 16 * 1024 * 1024
_ATTN_VMEM_LIMIT = 40 * 1024 * 1024


def _pick_tbh(BH, bytes_per_group, budget_bytes=_ATTN_VMEM_BUDGET):
    """Largest BH-divisor tile that fits the VMEM budget; keep >= 2 grid steps."""
    cap = max(1, int(budget_bytes // max(bytes_per_group, 1)))
    tbh = min(BH, cap)
    while BH % tbh:
        tbh -= 1
    # Keep >= 2 grid steps when possible so v7x megacore can shard the grid
    # across its two TensorCores (costs one extra cheap step on v5e/v6e).
    if BH >= 2 and BH // tbh < 2:
        tbh = max(1, BH // 2)
        while BH % tbh:
            tbh -= 1
    # TODO(synk): when BH is prime this degrades to tbh=1 (many tiny steps);
    # padding BH up to a divisible size and slicing the output would avoid it.
    return tbh


def hs_attn_pallas(q, k, v, rpe, scale):
    """q/k/v: (BH, nWin, N, d) bf16.  rpe: (nWin, N, N) f32 or None.

    Returns a lane-dense (BH, nWin, N*d) bf16 slab; caller reshapes back."""
    BH, nWin, N, d = q.shape
    tbh = _pick_tbh(BH, _group_bytes(nWin, N, d))
    grid = (BH // tbh,)
    qkv_spec = pl.BlockSpec((tbh, nWin, N, d), lambda i: (i, 0, 0, 0))
    out_spec = pl.BlockSpec((tbh, nWin, N * d), lambda i: (i, 0, 0))
    if rpe is None:
        kernel = functools.partial(hs_attn_plain_kernel, scale=scale)
        in_specs = [qkv_spec, qkv_spec, qkv_spec]
        args = (q, k, v)
    else:
        kernel = functools.partial(hs_attn_rpe_kernel, scale=scale)
        # rpe index_map is constant -> the (nWin, N, N) tile is DMA'd once and
        # reused across every batch*head block (deduped B*num_heads times).
        rpe_spec = pl.BlockSpec((nWin, N, N), lambda i: (0, 0, 0))
        in_specs = [qkv_spec, qkv_spec, qkv_spec, rpe_spec]
        args = (q, k, v, rpe)
    return pl.pallas_call(
        kernel,
        out_shape=jax.ShapeDtypeStruct((BH, nWin, N * d), jnp.bfloat16),
        grid=grid,
        in_specs=in_specs,
        out_specs=out_spec,
        compiler_params=pltpu.CompilerParams(
            dimension_semantics=("parallel",),
            vmem_limit_bytes=_ATTN_VMEM_LIMIT),
    )(*args)


# ---------------------------------------------------------------------------
# Glue (plain JAX): window/head layout, polar relative PE
# ---------------------------------------------------------------------------
def compute_polar_rpe(polar_coord, idx, H, W, H_sp, W_sp):
    # TODO(synk): Hrelative_dis_compute / Vrelative_dis_compute are undefined in
    # the reference; implemented as per-window pairwise differences of the
    # relevant polar channel (theta for idx==1, phi for idx==0), batch 0 only
    # (matching the reference's [0, ...] indexing).
    coord = polar_coord[0, :, :, 1] if idx == 0 else polar_coord[0, :, :, 0]
    c = coord.reshape(H // H_sp, H_sp, W // W_sp, W_sp)
    c = jnp.transpose(c, (0, 2, 1, 3)).reshape(-1, H_sp * W_sp)   # (nWin, N)
    return (c[:, :, None] - c[:, None, :]).astype(jnp.float32)     # (nWin, N, N)


def hs_attention_forward(temp, polar_coord, conv_w, conv_b, *,
                         idx, split_size, num_heads):
    three, B, C, H, W = temp.shape
    assert three == 3
    if idx == -1:
        H_sp, W_sp = H, W
    elif idx == 0:
        H_sp, W_sp = H, split_size
    elif idx == 1:
        H_sp, W_sp = split_size, W
    else:
        raise ValueError("ERROR MODE in forward")

    # TODO(synk): left/right/top/down pads are undefined in the reference; H, W
    # are divisible by (H_sp, W_sp) here so padding is zero.
    assert H % H_sp == 0 and W % W_sp == 0

    q, k, v_nchw = temp[0], temp[1], temp[2]
    N = H_sp * W_sp
    d = C // num_heads
    scale = d ** -0.5
    nH, nW = H // H_sp, W // W_sp
    nWin = nH * nW

    # get_polar_rpe: locally enhance v with the depthwise conv (get_v).
    # Single NCHW->NHWC transpose; v stays NHWC afterwards (no round trip).
    v_nhwc = jnp.transpose(v_nchw, (0, 2, 3, 1))
    v_nhwc = depthwise_conv3x3_nhwc(v_nhwc, conv_w, conv_b)

    # TODO(synk): these head/window gathers could instead be expressed as
    # BlockSpec index_maps over the original NCHW/NHWC layouts (each head-window
    # is a rectangular tile), removing one extra HBM round trip of q/k/v; kept
    # XLA-side here for lowering safety.
    def heads_from_nchw(x):
        # (B, C, H, W) -> (B*heads, nWin, N, d), head-major channel split,
        # window order (nH, nW), token order (h_sp, w_sp).
        x = x.reshape(B, num_heads, d, nH, H_sp, nW, W_sp)
        x = jnp.transpose(x, (0, 1, 3, 5, 4, 6, 2))
        return x.reshape(B * num_heads, nWin, N, d)

    def heads_from_nhwc(x):
        # (B, H, W, C) -> (B*heads, nWin, N, d), same ordering as above.
        x = x.reshape(B, nH, H_sp, nW, W_sp, num_heads, d)
        x = jnp.transpose(x, (0, 5, 1, 3, 2, 4, 6))
        return x.reshape(B * num_heads, nWin, N, d)

    # bf16 storage for the MXU operands (f32 accumulation inside the kernel).
    qh = heads_from_nchw(q).astype(jnp.bfloat16)
    kh = heads_from_nchw(k).astype(jnp.bfloat16)
    vh = heads_from_nhwc(v_nhwc).astype(jnp.bfloat16)

    if idx == -1:
        rpe = None
    else:
        # Reference's `attn @ v + rpe` only broadcasts when head_dim == N.
        assert d == N, "reference forward requires head_dim == H_sp*W_sp"
        rpe = compute_polar_rpe(polar_coord, idx, H, W, H_sp, W_sp)  # (nWin,N,N)

    # Kernel returns a lane-dense (BH, nWin, N*d) bf16 slab; restore (N, d)
    # split in plain JAX outside the pallas_call.
    out = hs_attn_pallas(qh, kh, vh, rpe, scale)           # (B*heads, nWin, N*d)
    out = out.reshape(B, num_heads, nWin, N, d)

    # Back to the reference layout: (B*nWin, num_heads, N, d), windows major.
    # NOTE: output dtype is bfloat16 (documented deviation; downstream proj
    # is assumed to accept bf16).
    out = jnp.transpose(out, (0, 2, 1, 3, 4)).reshape(B * nWin, num_heads, N, d)
    return out


# ---------------------------------------------------------------------------
if __name__ == "__main__":
    B, C, H, W = 2, 32, 8, 8
    num_heads = 2
    split_size = 2      # idx=0 -> window (H_sp, W_sp) = (8, 2), N = 16 = head_dim

    key = jax.random.PRNGKey(0)
    k1, k2, k3 = jax.random.split(key, 3)
    temp = jax.random.normal(k1, (3, B, C, H, W), jnp.float32)
    polar_coord = jax.random.normal(k2, (B, H, W, 2), jnp.float32)
    # get_v: nn.Conv2d(dim, dim, 3, 1, 1, groups=dim) -> weight (C, 1, 3, 3), bias (C,)
    conv_w = 0.1 * jax.random.normal(k3, (C, 1, 3, 3), jnp.float32)
    conv_b = jnp.zeros((C,), jnp.float32)

    # Windowed branch (exercises RPE + L1-norm/cos kernel).
    out0 = hs_attention_forward(temp, polar_coord, conv_w, conv_b,
                                idx=0, split_size=split_size, num_heads=num_heads)
    jax.block_until_ready(out0)

    # Full-attention branch (exercises the rpe-free kernel).
    out_full = hs_attention_forward(temp, polar_coord, conv_w, conv_b,
                                    idx=-1, split_size=split_size,
                                    num_heads=num_heads)
    jax.block_until_ready(out_full)

    print("KERNEL_OK")
</pallas_src>

<mosaic_0001>
module attributes {stable_mosaic.version = 11 : i64} {
  func.func @dwconv3x3_kernel(%arg0: i32, %arg1: memref<1x10x10x32xf32, #tpu.memory_space<vmem>>, %arg2: memref<3x3x32xf32, #tpu.memory_space<vmem>>, %arg3: memref<1x1x32xf32, #tpu.memory_space<vmem>>, %arg4: memref<1x8x8x32xf32, #tpu.memory_space<vmem>>) attributes {dimension_semantics = [#tpu.dimension_semantics<parallel>], iteration_bounds = array<i64: 2>, scalar_prefetch = 0 : i64, scratch_operands = 0 : i64, tpu.core_type = #tpu.core_type<tc>, window_params = [{transform_indices = @transform_0, window_bounds = array<i64: 1, 10, 10, 32>}, {pipeline_mode = #tpu.pipeline_mode<synchronous>, transform_indices = @transform_1, window_bounds = array<i64: 3, 3, 32>}, {pipeline_mode = #tpu.pipeline_mode<synchronous>, transform_indices = @transform_2, window_bounds = array<i64: 1, 1, 32>}, {transform_indices = @transform_3, window_bounds = array<i64: 1, 8, 8, 32>}]} {
    %c0 = arith.constant 0 : index
    %c0_0 = arith.constant 0 : index
    %c0_1 = arith.constant 0 : index
    %c0_2 = arith.constant 0 : index
    %0 = vector.load %arg1[%c0, %c0_0, %c0_1, %c0_2] : memref<1x10x10x32xf32, #tpu.memory_space<vmem>>, vector<1x10x10x32xf32>
    %c0_3 = arith.constant 0 : index
    %c0_4 = arith.constant 0 : index
    %c0_5 = arith.constant 0 : index
    %1 = vector.load %arg2[%c0_3, %c0_4, %c0_5] : memref<3x3x32xf32, #tpu.memory_space<vmem>>, vector<3x3x32xf32>
    %cst = arith.constant 0.000000e+00 : f32
    %2 = vector.broadcast %cst : f32 to vector<1x8x8x32xf32>
    %3 = vector.extract_strided_slice %0 {offsets = [0, 0, 0, 0], sizes = [1, 8, 8, 32], strides = [1, 1, 1, 1]} : vector<1x10x10x32xf32> to vector<1x8x8x32xf32>
    %4 = vector.extract_strided_slice %1 {offsets = [0, 0, 0], sizes = [1, 1, 32], strides = [1, 1, 1]} : vector<3x3x32xf32> to vector<1x1x32xf32>
    %5 = vector.shape_cast %4 : vector<1x1x32xf32> to vector<32xf32>
    %6 = vector.shape_cast %5 : vector<32xf32> to vector<1x1x1x32xf32>
    %7 = vector.broadcast %6 : vector<1x1x1x32xf32> to vector<1x8x8x32xf32>
    %8 = arith.mulf %3, %7 : vector<1x8x8x32xf32>
    %9 = arith.addf %2, %8 : vector<1x8x8x32xf32>
    %10 = vector.extract_strided_slice %0 {offsets = [0, 0, 1, 0], sizes = [1, 8, 8, 32], strides = [1, 1, 1, 1]} : vector<1x10x10x32xf32> to vector<1x8x8x32xf32>
    %11 = vector.extract_strided_slice %1 {offsets = [0, 1, 0], sizes = [1, 1, 32], strides = [1, 1, 1]} : vector<3x3x32xf32> to vector<1x1x32xf32>
    %12 = vector.shape_cast %11 : vector<1x1x32xf32> to vector<32xf32>
    %13 = vector.shape_cast %12 : vector<32xf32> to vector<1x1x1x32xf32>
    %14 = vector.broadcast %13 : vector<1x1x1x32xf32> to vector<1x8x8x32xf32>
    %15 = arith.mulf %10, %14 : vector<1x8x8x32xf32>
    %16 = arith.addf %9, %15 : vector<1x8x8x32xf32>
    %17 = vector.extract_strided_slice %0 {offsets = [0, 0, 2, 0], sizes = [1, 8, 8, 32], strides = [1, 1, 1, 1]} : vector<1x10x10x32xf32> to vector<1x8x8x32xf32>
    %18 = vector.extract_strided_slice %1 {offsets = [0, 2, 0], sizes = [1, 1, 32], strides = [1, 1, 1]} : vector<3x3x32xf32> to vector<1x1x32xf32>
    %19 = vector.shape_cast %18 : vector<1x1x32xf32> to vector<32xf32>
    %20 = vector.shape_cast %19 : vector<32xf32> to vector<1x1x1x32xf32>
    %21 = vector.broadcast %20 : vector<1x1x1x32xf32> to vector<1x8x8x32xf32>
    %22 = arith.mulf %17, %21 : vector<1x8x8x32xf32>
    %23 = arith.addf %16, %22 : vector<1x8x8x32xf32>
    %24 = vector.extract_strided_slice %0 {offsets = [0, 1, 0, 0], sizes = [1, 8, 8, 32], strides = [1, 1, 1, 1]} : vector<1x10x10x32xf32> to vector<1x8x8x32xf32>
    %25 = vector.extract_strided_slice %1 {offsets = [1, 0, 0], sizes = [1, 1, 32], strides = [1, 1, 1]} : vector<3x3x32xf32> to vector<1x1x32xf32>
    %26 = vector.shape_cast %25 : vector<1x1x32xf32> to vector<32xf32>
    %27 = vector.shape_cast %26 : vector<32xf32> to vector<1x1x1x32xf32>
    %28 = vector.broadcast %27 : vector<1x1x1x32xf32> to vector<1x8x8x32xf32>
    %29 = arith.mulf %24, %28 : vector<1x8x8x32xf32>
    %30 = arith.addf %23, %29 : vector<1x8x8x32xf32>
    %31 = vector.extract_strided_slice %0 {offsets = [0, 1, 1, 0], sizes = [1, 8, 8, 32], strides = [1, 1, 1, 1]} : vector<1x10x10x32xf32> to vector<1x8x8x32xf32>
    %32 = vector.extract_strided_slice %1 {offsets = [1, 1, 0], sizes = [1, 1, 32], strides = [1, 1, 1]} : vector<3x3x32xf32> to vector<1x1x32xf32>
    %33 = vector.shape_cast %32 : vector<1x1x32xf32> to vector<32xf32>
    %34 = vector.shape_cast %33 : vector<32xf32> to vector<1x1x1x32xf32>
    %35 = vector.broadcast %34 : vector<1x1x1x32xf32> to vector<1x8x8x32xf32>
    %36 = arith.mulf %31, %35 : vector<1x8x8x32xf32>
    %37 = arith.addf %30, %36 : vector<1x8x8x32xf32>
    %38 = vector.extract_strided_slice %0 {offsets = [0, 1, 2, 0], sizes = [1, 8, 8, 32], strides = [1, 1, 1, 1]} : vector<1x10x10x32xf32> to vector<1x8x8x32xf32>
    %39 = vector.extract_strided_slice %1 {offsets = [1, 2, 0], sizes = [1, 1, 32], strides = [1, 1, 1]} : vector<3x3x32xf32> to vector<1x1x32xf32>
    %40 = vector.shape_cast %39 : vector<1x1x32xf32> to vector<32xf32>
    %41 = vector.shape_cast %40 : vector<32xf32> to vector<1x1x1x32xf32>
    %42 = vector.broadcast %41 : vector<1x1x1x32xf32> to vector<1x8x8x32xf32>
    %43 = arith.mulf %38, %42 : vector<1x8x8x32xf32>
    %44 = arith.addf %37, %43 : vector<1x8x8x32xf32>
    %45 = vector.extract_strided_slice %0 {offsets = [0, 2, 0, 0], sizes = [1, 8, 8, 32], strides = [1, 1, 1, 1]} : vector<1x10x10x32xf32> to vector<1x8x8x32xf32>
    %46 = vector.extract_strided_slice %1 {offsets = [2, 0, 0], sizes = [1, 1, 32], strides = [1, 1, 1]} : vector<3x3x32xf32> to vector<1x1x32xf32>
    %47 = vector.shape_cast %46 : vector<1x1x32xf32> to vector<32xf32>
    %48 = vector.shape_cast %47 : vector<32xf32> to vector<1x1x1x32xf32>
    %49 = vector.broadcast %48 : vector<1x1x1x32xf32> to vector<1x8x8x32xf32>
    %50 = arith.mulf %45, %49 : vector<1x8x8x32xf32>
    %51 = arith.addf %44, %50 : vector<1x8x8x32xf32>
    %52 = vector.extract_strided_slice %0 {offsets = [0, 2, 1, 0], sizes = [1, 8, 8, 32], strides = [1, 1, 1, 1]} : vector<1x10x10x32xf32> to vector<1x8x8x32xf32>
    %53 = vector.extract_strided_slice %1 {offsets = [2, 1, 0], sizes = [1, 1, 32], strides = [1, 1, 1]} : vector<3x3x32xf32> to vector<1x1x32xf32>
    %54 = vector.shape_cast %53 : vector<1x1x32xf32> to vector<32xf32>
    %55 = vector.shape_cast %54 : vector<32xf32> to vector<1x1x1x32xf32>
    %56 = vector.broadcast %55 : vector<1x1x1x32xf32> to vector<1x8x8x32xf32>
    %57 = arith.mulf %52, %56 : vector<1x8x8x32xf32>
    %58 = arith.addf %51, %57 : vector<1x8x8x32xf32>
    %59 = vector.extract_strided_slice %0 {offsets = [0, 2, 2, 0], sizes = [1, 8, 8, 32], strides = [1, 1, 1, 1]} : vector<1x10x10x32xf32> to vector<1x8x8x32xf32>
    %60 = vector.extract_strided_slice %1 {offsets = [2, 2, 0], sizes = [1, 1, 32], strides = [1, 1, 1]} : vector<3x3x32xf32> to vector<1x1x32xf32>
    %61 = vector.shape_cast %60 : vector<1x1x32xf32> to vector<32xf32>
    %62 = vector.shape_cast %61 : vector<32xf32> to vector<1x1x1x32xf32>
    %63 = vector.broadcast %62 : vector<1x1x1x32xf32> to vector<1x8x8x32xf32>
    %64 = arith.mulf %59, %63 : vector<1x8x8x32xf32>
    %65 = arith.addf %58, %64 : vector<1x8x8x32xf32>
    %c0_6 = arith.constant 0 : index
    %c0_7 = arith.constant 0 : index
    %c0_8 = arith.constant 0 : index
    %66 = vector.load %arg3[%c0_6, %c0_7, %c0_8] : memref<1x1x32xf32, #tpu.memory_space<vmem>>, vector<1x1x32xf32>
    %67 = vector.shape_cast %66 : vector<1x1x32xf32> to vector<1x1x1x32xf32>
    %68 = vector.broadcast %67 : vector<1x1x1x32xf32> to vector<1x8x8x32xf32>
    %69 = arith.addf %65, %68 : vector<1x8x8x32xf32>
    %c0_9 = arith.constant 0 : index
    %c0_10 = arith.constant 0 : index
    %c0_11 = arith.constant 0 : index
    %c0_12 = arith.constant 0 : index
    %70 = vector.load %arg4[%c0_9, %c0_10, %c0_11, %c0_12] : memref<1x8x8x32xf32, #tpu.memory_space<vmem>>, vector<1x8x8x32xf32>
    tpu.vector_store %arg4[%c0_9, %c0_10, %c0_11, %c0_12], %69 {strides = array<i32>} : memref<1x8x8x32xf32, #tpu.memory_space<vmem>>, vector<1x8x8x32xf32>,
    return
  }
  func.func @transform_0(%arg0: i32) -> (i32, i32, i32, i32) {
    %c0_i32 = arith.constant 0 : i32
    %c0_i32_0 = arith.constant 0 : i32
    %c0_i32_1 = arith.constant 0 : i32
    %c0_i32_2 = arith.constant 0 : i32
    return %arg0, %c0_i32, %c0_i32_0, %c0_i32_1 : i32, i32, i32, i32
  }
  func.func @transform_1(%arg0: i32) -> (i32, i32, i32) {
    %c0_i32 = arith.constant 0 : i32
    %c0_i32_0 = arith.constant 0 : i32
    %c0_i32_1 = arith.constant 0 : i32
    %c0_i32_2 = arith.constant 0 : i32
    return %c0_i32, %c0_i32_0, %c0_i32_1 : i32, i32, i32
  }
  func.func @transform_2(%arg0: i32) -> (i32, i32, i32) {
    %c0_i32 = arith.constant 0 : i32
    %c0_i32_0 = arith.constant 0 : i32
    %c0_i32_1 = arith.constant 0 : i32
    %c0_i32_2 = arith.constant 0 : i32
    return %c0_i32, %c0_i32_0, %c0_i32_1 : i32, i32, i32
  }
  func.func @transform_3(%arg0: i32) -> (i32, i32, i32, i32) {
    %c0_i32 = arith.constant 0 : i32
    %c0_i32_0 = arith.constant 0 : i32
    %c0_i32_1 = arith.constant 0 : i32
    %c0_i32_2 = arith.constant 0 : i32
    return %arg0, %c0_i32, %c0_i32_0, %c0_i32_1 : i32, i32, i32, i32
  }
}

</mosaic_0001>

<llo_original>
// kernel: tpu_custom_call.1
$region0: #{tpu_custom_call.1}
  #allocation0 [shape = 'u32[]', space=smem, size = 0x4, offset = 0x4, fixed_abs, tag = 'smem constant byte address 0x4 - core index']
  #allocation1 [shape = 'u32[72,128]{1,0:T(1,128)}', space=vmem, size = 0x9000, scoped, tag = 'internal scratch']
  %s0 = inlined_call_operand.vmem [shape: f32[2,10,10,32], index: 0, kind: input, shape index: {}]
  %s1 = inlined_call_operand.vmem [shape: f32[3,3,32], index: 1, kind: input, shape index: {}]
  %s2 = inlined_call_operand.vmem [shape: f32[1,1,32], index: 2, kind: input, shape index: {}]
  %s3 = inlined_call_operand.hbm [shape: f32[2,8,8,32], index: 3, kind: output, shape index: {}]
  %s4 = sld [smem:[#allocation0]]
  $region45: #{tpu_custom_call.1} parent=0
    _
  %s6 = ssub.s32 1, %s4
  %s7 = scalar_select 0, %s6, %s4
  $region1: #{tpu_custom_call.1} parent=0
    #allocation2 [shape = 'u8[65536]{0}', space=vmem, size = 0x10000, scoped, tag = 'output window, operand 0']
    #allocation3 [shape = 's32[2]{0}', space=sflag, size = 0x8, scoped, tag = 'scoped memory for tpu_custom_call.1']
    %8 = vsyncpa [#allocation3], 0
    %s9 = scalar_lea.sflag [#allocation3], 1
    %10 = vsyncpa %s9, 0
    loop: start=0, step=1, limit=4
    $region2: #{tpu_custom_call.1} parent=1 // loop_pre_header
      _
    $region3: #{tpu_custom_call.1} parent=1 // loop_header
      %s12 = sphi 0, %s16
      %p13 = scmp.ge.s32.totalorder %s12, 4
      %s22 = sphi 0, %s24
      %s25 = sphi 0, %s22
      %s26 = sphi 0, %s25
      %s42 = sphi 0, %s26
      %s46 = sphi 0, %s46
      %s48 = sphi 0, %s46
      %s49 = sphi 0, %s48
      %s63 = sphi 0, %s49
      %s67 = sphi 0, %s67
      %s69 = sphi 0, %s67
      %s70 = sphi 0, %s69
      %s84 = sphi 0, %s70
      %s90 = sphi 0, %s92
      %s93 = sphi 0, %s90
      %s94 = sphi 0, %s93
      %s110 = sphi 0, %s94
    $region4: #{tpu_custom_call.1} parent=1 // loop_header_branch
      %15 = sbr.rel (%p13) target = $region8
    $region5: #{tpu_custom_call.1} parent=1 // loop_body
      %s17 = ssub.s32 %s12, 1
      %s18 = ssub.s32 %s12, 2
      %s19 = sadd.s32 %s12, 1
      %s20 = ssub.s32 %s12, %s19
      %p21 = scmp.eq.s32.totalorder %s20, 0
      %s23 = sadd.s32 %s22, 1
      %s24 = scalar_select %p21, %s22, %s23
      %p27 = pneg %p21
      %p28 = scmp.eq.s32.totalorder %s12, 1
      %p29 = por %p27, %p28
      %p30 = scmp.ne.s32.totalorder %s22, %s25
      %p31 = scmp.eq.s32.totalorder %s12, 0
      %p32 = por %p30, %p31
      %p33 = scmp.ne.s32.totalorder %s22, %s25
      %p34 = scmp.eq.s32.totalorder %s17, 1
      %p35 = por %p33, %p34
      %p36 = scmp.ne.s32.totalorder %s25, %s26
      %p37 = scmp.eq.s32.totalorder %s17, 0
      %p38 = por %p36, %p37
      %p39 = scmp.ne.s32.totalorder %s25, %s26
      %p40 = scmp.eq.s32.totalorder %s18, 1
      %p41 = por %p39, %p40
      %p43 = scmp.ne.s32.totalorder %s26, %s42
      %p44 = scmp.eq.s32.totalorder %s18, 0
      %p45 = por %p43, %p44
      %s47 = sadd.s32 %s46, 1
      %p50 = scmp.eq.s32.totalorder %s12, 1
      %p51 = scmp.ne.s32.totalorder %s46, %s48
      %p52 = scmp.eq.s32.totalorder %s12, 0
      %p53 = por %p51, %p52
      %p54 = scmp.ne.s32.totalorder %s46, %s48
      %p55 = scmp.eq.s32.totalorder %s17, 1
      %p56 = por %p54, %p55
      %p57 = scmp.ne.s32.totalorder %s48, %s49
      %p58 = scmp.eq.s32.totalorder %s17, 0
      %p59 = por %p57, %p58
      %p60 = scmp.ne.s32.totalorder %s48, %s49
      %p61 = scmp.eq.s32.totalorder %s18, 1
      %p62 = por %p60, %p61
      %p64 = scmp.ne.s32.totalorder %s49, %s63
      %p65 = scmp.eq.s32.totalorder %s18, 0
      %p66 = por %p64, %p65
      %s68 = sadd.s32 %s67, 1
      %p71 = scmp.eq.s32.totalorder %s12, 1
      %p72 = scmp.ne.s32.totalorder %s67, %s69
      %p73 = scmp.eq.s32.totalorder %s12, 0
      %p74 = por %p72, %p73
      %p75 = scmp.ne.s32.totalorder %s67, %s69
      %p76 = scmp.eq.s32.totalorder %s17, 1
      %p77 = por %p75, %p76
      %p78 = scmp.ne.s32.totalorder %s69, %s70
      %p79 = scmp.eq.s32.totalorder %s17, 0
      %p80 = por %p78, %p79
      %p81 = scmp.ne.s32.totalorder %s69, %s70
      %p82 = scmp.eq.s32.totalorder %s18, 1
      %p83 = por %p81, %p82
      %p85 = scmp.ne.s32.totalorder %s70, %s84
      %p86 = scmp.eq.s32.totalorder %s18, 0
      %p87 = por %p85, %p86
      %s88 = ssub.s32 %s12, %s19
      %p89 = scmp.eq.s32.totalorder %s88, 0
      %s91 = sadd.s32 %s90, 1
      %s92 = scalar_select %p89, %s90, %s91
      %p95 = pneg %p89
      %p96 = scmp.eq.s32.totalorder %s12, 1
      %p97 = por %p95, %p96
      %p98 = scmp.ne.s32.totalorder %s90, %s93
      %p99 = scmp.eq.s32.totalorder %s12, 0
      %p100 = por %p98, %p99
      %p101 = scmp.ne.s32.totalorder %s90, %s93
      %p102 = scmp.eq.s32.totalorder %s17, 1
      %p103 = por %p101, %p102
      %p104 = scmp.ne.s32.totalorder %s93, %s94
      %p105 = scmp.eq.s32.totalorder %s17, 0
      %p106 = por %p104, %p105
      %p107 = scmp.ne.s32.totalorder %s93, %s94
      %p108 = scmp.eq.s32.totalorder %s18, 1
      %p109 = por %p107, %p108
      %p111 = scmp.ne.s32.totalorder %s94, %s110
      %p112 = scmp.eq.s32.totalorder %s18, 0
      %p113 = por %p111, %p112
      %p114 = scmp.le.s32.totalorder 1, %s12
      %p115 = scmp.lt.s32.totalorder %s12, 3
      %p116 = pnand %p114, %p115
      %p117 = pneg %p116
      // Predicated region
      $region9: #{tpu_custom_call.1} parent=5 // pred_check
        _
      $region10: #{tpu_custom_call.1} parent=5 // pred_check_branch
        %119 = sbr.rel (%p116) target = $region12
      $region11: #{tpu_custom_call.1} parent=5 // pred_region
        %s120 = ssub.s32 %s12, 1
        // Predicated region
        $region13: #{tpu_custom_call.1} parent=11 // pred_check
          %p121 = pneg %p59
        $region14: #{tpu_custom_call.1} parent=11 // pred_check_branch
          %123 = sbr.rel (%p121) target = $region16
        $region15: #{tpu_custom_call.1} parent=11 // pred_region
          _
        $region16: #{tpu_custom_call.1} parent=11 // pred_fallthru
          _
        // Predicated region
        $region17: #{tpu_custom_call.1} parent=11 // pred_check
          %p124 = pneg %p80
        $region18: #{tpu_custom_call.1} parent=11 // pred_check_branch
          %126 = sbr.rel (%p124) target = $region20
        $region19: #{tpu_custom_call.1} parent=11 // pred_region
          _
        $region20: #{tpu_custom_call.1} parent=11 // pred_fallthru
          _
      $region12: #{tpu_custom_call.1} parent=5 // pred_fallthru
        _
      %p127 = scmp.lt.s32.totalorder %s12, 2
      // Predicated region
      $region21: #{tpu_custom_call.1} parent=5 // pred_check
        %p128 = pneg %p127
      $region22: #{tpu_custom_call.1} parent=5 // pred_check_branch
        %130 = sbr.rel (%p128) target = $region24
      $region23: #{tpu_custom_call.1} parent=5 // pred_region
        // Predicated region
        $region25: #{tpu_custom_call.1} parent=23 // pred_check
          %p131 = pneg %p32
        $region26: #{tpu_custom_call.1} parent=23 // pred_check_branch
          %133 = sbr.rel (%p131) target = $region28
        $region27: #{tpu_custom_call.1} parent=23 // pred_region
          %p134 = scmp.lt.s32.totalorder %s12, 1
          %s135 = scalar_select %p134, %s12, 1
          %s136 = smul.addr %s135, 20
          %s137 = smul.addr %s136, 8
          %s138 = scalar_lea.vmem %s0, %s137
        $region28: #{tpu_custom_call.1} parent=23 // pred_fallthru
          _
      $region24: #{tpu_custom_call.1} parent=5 // pred_fallthru
        _
      %p139 = scmp.le.s32.totalorder 1, %s12
      %p140 = scmp.lt.s32.totalorder %s12, 3
      %p141 = pnand %p139, %p140
      %p142 = pneg %p141
      // Predicated region
      $region29: #{tpu_custom_call.1} parent=5 // pred_check
        _
      $region30: #{tpu_custom_call.1} parent=5 // pred_check_branch
        %144 = sbr.rel (%p141) target = $region32
      $region31: #{tpu_custom_call.1} parent=5 // pred_region
        %s145 = ssub.s32 %s12, 1
        %p146 = scmp.lt.s32.totalorder %s17, 1
        %s147 = scalar_select %p146, %s17, 1
        %s148 = smul.addr %s147, 20
        %s149 = smul.addr %s148, 8
        %s150 = scalar_lea.vmem %s0, %s149
        %p151 = pneg %p38
        %p152 = pneg %p35
        %p153 = pneg %p59
        %p154 = pneg %p56
        %p155 = pneg %p80
        %p156 = pneg %p77
        %p157 = pneg %p106
        %p158 = pneg %p103
        %s159 = sand.u32 %s93, 1
        %s160 = scalar_lea.sflag [#allocation3], %s159
        %s161 = sand.u32 %s93, 1
        %s162 = smul.addr %s161, 64
        %s163 = scalar_lea.vmem [#allocation2], %s162
        %p164 = scmp.lt.s32.totalorder %s17, 1
        %s165 = scalar_select %p164, %s17, 1
        %s166 = smul.addr %s165, 20
        %s167 = smul.addr %s166, 8
        %s168 = scalar_lea.vmem %s0, %s167
        %v169 = vld [vmem:[%s168] sm:$0xff]
        %v170 = vld [vmem:[%s168 + $0x8] sm:$0x3]
        %v171 = vld [vmem:[%s168 + $0x10] sm:$0xff]
        %v172 = vld [vmem:[%s168 + $0x18] sm:$0x3]
        %v173 = vld [vmem:[%s168 + $0x20] sm:$0xff]
        %v174 = vld [vmem:[%s168 + $0x28] sm:$0x3]
        %v175 = vld [vmem:[%s168 + $0x30] sm:$0xff]
        %v176 = vld [vmem:[%s168 + $0x38] sm:$0x3]
        %v177 = vld [vmem:[%s168 + $0x40] sm:$0xff]
        %v178 = vld [vmem:[%s168 + $0x48] sm:$0x3]
        %v179 = vld [vmem:[%s168 + $0x50] sm:$0xff]
        %v180 = vld [vmem:[%s168 + $0x58] sm:$0x3]
        %v181 = vld [vmem:[%s168 + $0x60] sm:$0xff]
        %v182 = vld [vmem:[%s168 + $0x68] sm:$0x3]
        %v183 = vld [vmem:[%s168 + $0x70] sm:$0xff]
        %v184 = vld [vmem:[%s168 + $0x78] sm:$0x3]
        %v185 = vld [vmem:[%s168 + $0x80] sm:$0xff]
        %v186 = vld [vmem:[%s168 + $0x88] sm:$0x3]
        %v187 = vld [vmem:[%s168 + $0x90] sm:$0xff]
        %v188 = vld [vmem:[%s168 + $0x98] sm:$0x3]
        %v189 = vld [vmem:[%s1] sm:$0x7]
        %v190 = vld [vmem:[%s1 + $0x4] sm:$0x7]
        %v191 = vld [vmem:[%s1 + $0x8] sm:$0x7]
        %v192 = vperm.slane %v189, 0
        %v193 = vmul.f32 %v169, %v192
        %v194 = vmul.f32 %v171, %v192
        %v195 = vmul.f32 %v173, %v192
        %v196 = vmul.f32 %v175, %v192
        %v197 = vmul.f32 %v177, %v192
        %v198 = vmul.f32 %v179, %v192
        %v199 = vmul.f32 %v181, %v192
        %v200 = vmul.f32 %v183, %v192
        %v201 = vadd.f32 %v193, 0.0
        %v202 = vadd.f32 %v194, 0.0
        %v203 = vadd.f32 %v195, 0.0
        %v204 = vadd.f32 %v196, 0.0
        %v205 = vadd.f32 %v197, 0.0
        %v206 = vadd.f32 %v198, 0.0
        %v207 = vadd.f32 %v199, 0.0
        %v208 = vadd.f32 %v200, 0.0
        %v209 = vperm.slane %v189, 1
        %v210 = vmul.f32 %v169, %v209
        %v211 = vmul.f32 %v170, %v209
        %v212 = vmul.f32 %v171, %v209
        %v213 = vmul.f32 %v172, %v209
        %v214 = vmul.f32 %v173, %v209
        %v215 = vmul.f32 %v174, %v209
        %v216 = vmul.f32 %v175, %v209
        %v217 = vmul.f32 %v176, %v209
        %v218 = vmul.f32 %v177, %v209
        %v219 = vmul.f32 %v178, %v209
        %v220 = vmul.f32 %v179, %v209
        %v221 = vmul.f32 %v180, %v209
        %v222 = vmul.f32 %v181, %v209
        %v223 = vmul.f32 %v182, %v209
        %v224 = vmul.f32 %v183, %v209
        %v225 = vmul.f32 %v184, %v209
        %vm242 = vcmask 1046528
        %v243 = vrot.slane %v210, 1
        %v244 = vrot.slane %v211, 1
        %v245 = vsel %vm242, %v243, %v244
        %v246 = vrot.slane %v212, 1
        %v247 = vrot.slane %v213, 1
        %v248 = vsel %vm242, %v246, %v247
        %v249 = vrot.slane %v214, 1
        %v250 = vrot.slane %v215, 1
        %v251 = vsel %vm242, %v249, %v250
        %v252 = vrot.slane %v216, 1
        %v253 = vrot.slane %v217, 1
        %v254 = vsel %vm242, %v252, %v253
        %v255 = vrot.slane %v218, 1
        %v256 = vrot.slane %v219, 1
        %v257 = vsel %vm242, %v255, %v256
        %v258 = vrot.slane %v220, 1
        %v259 = vrot.slane %v221, 1
        %v260 = vsel %vm242, %v258, %v259
        %v261 = vrot.slane %v222, 1
        %v262 = vrot.slane %v223, 1
        %v263 = vsel %vm242, %v261, %v262
        %v264 = vrot.slane %v224, 1
        %v265 = vrot.slane %v225, 1
        %v266 = vsel %vm242, %v264, %v265
        %v275 = vadd.f32 %v201, %v245
        %v276 = vadd.f32 %v202, %v248
        %v277 = vadd.f32 %v203, %v251
        %v278 = vadd.f32 %v204, %v254
        %v279 = vadd.f32 %v205, %v257
        %v280 = vadd.f32 %v206, %v260
        %v281 = vadd.f32 %v207, %v263
        %v282 = vadd.f32 %v208, %v266
        %v283 = vperm.slane %v189, 2
        %v284 = vmul.f32 %v169, %v283
        %v285 = vmul.f32 %v170, %v283
        %v286 = vmul.f32 %v171, %v283
        %v287 = vmul.f32 %v172, %v283
        %v288 = vmul.f32 %v173, %v283
        %v289 = vmul.f32 %v174, %v283
        %v290 = vmul.f32 %v175, %v283
        %v291 = vmul.f32 %v176, %v283
        %v292 = vmul.f32 %v177, %v283
        %v293 = vmul.f32 %v178, %v283
        %v294 = vmul.f32 %v179, %v283
        %v295 = vmul.f32 %v180, %v283
        %v296 = vmul.f32 %v181, %v283
        %v297 = vmul.f32 %v182, %v283
        %v298 = vmul.f32 %v183, %v283
        %v299 = vmul.f32 %v184, %v283
        %vm316 = vcmask 1045504
        %v317 = vrot.slane %v284, 2
        %v318 = vrot.slane %v285, 2
        %v319 = vsel %vm316, %v317, %v318
        %v320 = vrot.slane %v286, 2
        %v321 = vrot.slane %v287, 2
        %v322 = vsel %vm316, %v320, %v321
        %v323 = vrot.slane %v288, 2
        %v324 = vrot.slane %v289, 2
        %v325 = vsel %vm316, %v323, %v324
        %v326 = vrot.slane %v290, 2
        %v327 = vrot.slane %v291, 2
        %v328 = vsel %vm316, %v326, %v327
        %v329 = vrot.slane %v292, 2
        %v330 = vrot.slane %v293, 2
        %v331 = vsel %vm316, %v329, %v330
        %v332 = vrot.slane %v294, 2
        %v333 = vrot.slane %v295, 2
        %v334 = vsel %vm316, %v332, %v333
        %v335 = vrot.slane %v296, 2
        %v336 = vrot.slane %v297, 2
        %v337 = vsel %vm316, %v335, %v336
        %v338 = vrot.slane %v298, 2
        %v339 = vrot.slane %v299, 2
        %v340 = vsel %vm316, %v338, %v339
        %v349 = vadd.f32 %v275, %v319
        %v350 = vadd.f32 %v276, %v322
        %v351 = vadd.f32 %v277, %v325
        %v352 = vadd.f32 %v278, %v328
        %v353 = vadd.f32 %v279, %v331
        %v354 = vadd.f32 %v280, %v334
        %v355 = vadd.f32 %v281, %v337
        %v356 = vadd.f32 %v282, %v340
        %v357 = vperm.slane %v190, 0
        %v358 = vmul.f32 %v171, %v357
        %v359 = vmul.f32 %v173, %v357
        %v360 = vmul.f32 %v175, %v357
        %v361 = vmul.f32 %v177, %v357
        %v362 = vmul.f32 %v179, %v357
        %v363 = vmul.f32 %v181, %v357
        %v364 = vmul.f32 %v183, %v357
        %v365 = vmul.f32 %v185, %v357
        %v366 = vadd.f32 %v349, %v358
        %v367 = vadd.f32 %v350, %v359
        %v368 = vadd.f32 %v351, %v360
        %v369 = vadd.f32 %v352, %v361
        %v370 = vadd.f32 %v353, %v362
        %v371 = vadd.f32 %v354, %v363
        %v372 = vadd.f32 %v355, %v364
        %v373 = vadd.f32 %v356, %v365
        %v374 = vperm.slane %v190, 1
        %v375 = vmul.f32 %v171, %v374
        %v376 = vmul.f32 %v172, %v374
        %v377 = vmul.f32 %v173, %v374
        %v378 = vmul.f32 %v174, %v374
        %v379 = vmul.f32 %v175, %v374
        %v380 = vmul.f32 %v176, %v374
        %v381 = vmul.f32 %v177, %v374
        %v382 = vmul.f32 %v178, %v374
        %v383 = vmul.f32 %v179, %v374
        %v384 = vmul.f32 %v180, %v374
        %v385 = vmul.f32 %v181, %v374
        %v386 = vmul.f32 %v182, %v374
        %v387 = vmul.f32 %v183, %v374
        %v388 = vmul.f32 %v184, %v374
        %v389 = vmul.f32 %v185, %v374
        %v390 = vmul.f32 %v186, %v374
        %v407 = vrot.slane %v375, 1
        %v408 = vrot.slane %v376, 1
        %v409 = vsel %vm242, %v407, %v408
        %v410 = vrot.slane %v377, 1
        %v411 = vrot.slane %v378, 1
        %v412 = vsel %vm242, %v410, %v411
        %v413 = vrot.slane %v379, 1
        %v414 = vrot.slane %v380, 1
        %v415 = vsel %vm242, %v413, %v414
        %v416 = vrot.slane %v381, 1
        %v417 = vrot.slane %v382, 1
        %v418 = vsel %vm242, %v416, %v417
        %v419 = vrot.slane %v383, 1
        %v420 = vrot.slane %v384, 1
        %v421 = vsel %vm242, %v419, %v420
        %v422 = vrot.slane %v385, 1
        %v423 = vrot.slane %v386, 1
        %v424 = vsel %vm242, %v422, %v423
        %v425 = vrot.slane %v387, 1
        %v426 = vrot.slane %v388, 1
        %v427 = vsel %vm242, %v425, %v426
        %v428 = vrot.slane %v389, 1
        %v429 = vrot.slane %v390, 1
        %v430 = vsel %vm242, %v428, %v429
        %v439 = vadd.f32 %v366, %v409
        %v440 = vadd.f32 %v367, %v412
        %v441 = vadd.f32 %v368, %v415
        %v442 = vadd.f32 %v369, %v418
        %v443 = vadd.f32 %v370, %v421
        %v444 = vadd.f32 %v371, %v424
        %v445 = vadd.f32 %v372, %v427
        %v446 = vadd.f32 %v373, %v430
        %v447 = vperm.slane %v190, 2
        %v448 = vmul.f32 %v171, %v447
        %v449 = vmul.f32 %v172, %v447
        %v450 = vmul.f32 %v173, %v447
        %v451 = vmul.f32 %v174, %v447
        %v452 = vmul.f32 %v175, %v447
        %v453 = vmul.f32 %v176, %v447
        %v454 = vmul.f32 %v177, %v447
        %v455 = vmul.f32 %v178, %v447
        %v456 = vmul.f32 %v179, %v447
        %v457 = vmul.f32 %v180, %v447
        %v458 = vmul.f32 %v181, %v447
        %v459 = vmul.f32 %v182, %v447
        %v460 = vmul.f32 %v183, %v447
        %v461 = vmul.f32 %v184, %v447
        %v462 = vmul.f32 %v185, %v447
        %v463 = vmul.f32 %v186, %v447
        %v480 = vrot.slane %v448, 2
        %v481 = vrot.slane %v449, 2
        %v482 = vsel %vm316, %v480, %v481
        %v483 = vrot.slane %v450, 2
        %v484 = vrot.slane %v451, 2
        %v485 = vsel %vm316, %v483, %v484
        %v486 = vrot.slane %v452, 2
        %v487 = vrot.slane %v453, 2
        %v488 = vsel %vm316, %v486, %v487
        %v489 = vrot.slane %v454, 2
        %v490 = vrot.slane %v455, 2
        %v491 = vsel %vm316, %v489, %v490
        %v492 = vrot.slane %v456, 2
        %v493 = vrot.slane %v457, 2
        %v494 = vsel %vm316, %v492, %v493
        %v495 = vrot.slane %v458, 2
        %v496 = vrot.slane %v459, 2
        %v497 = vsel %vm316, %v495, %v496
        %v498 = vrot.slane %v460, 2
        %v499 = vrot.slane %v461, 2
        %v500 = vsel %vm316, %v498, %v499
        %v501 = vrot.slane %v462, 2
        %v502 = vrot.slane %v463, 2
        %v503 = vsel %vm316, %v501, %v502
        %v512 = vadd.f32 %v439, %v482
        %v513 = vadd.f32 %v440, %v485
        %v514 = vadd.f32 %v441, %v488
        %v515 = vadd.f32 %v442, %v491
        %v516 = vadd.f32 %v443, %v494
        %v517 = vadd.f32 %v444, %v497
        %v518 = vadd.f32 %v445, %v500
        %v519 = vadd.f32 %v446, %v503
        %v520 = vperm.slane %v191, 0
        %v521 = vmul.f32 %v173, %v520
        %v522 = vmul.f32 %v175, %v520
        %v523 = vmul.f32 %v177, %v520
        %v524 = vmul.f32 %v179, %v520
        %v525 = vmul.f32 %v181, %v520
        %v526 = vmul.f32 %v183, %v520
        %v527 = vmul.f32 %v185, %v520
        %v528 = vmul.f32 %v187, %v520
        %v529 = vadd.f32 %v512, %v521
        %v530 = vadd.f32 %v513, %v522
        %v531 = vadd.f32 %v514, %v523
        %v532 = vadd.f32 %v515, %v524
        %v533 = vadd.f32 %v516, %v525
        %v534 = vadd.f32 %v517, %v526
        %v535 = vadd.f32 %v518, %v527
        %v536 = vadd.f32 %v519, %v528
        %v537 = vperm.slane %v191, 1
        %v538 = vmul.f32 %v173, %v537
        %v539 = vmul.f32 %v174, %v537
        %v540 = vmul.f32 %v175, %v537
        %v541 = vmul.f32 %v176, %v537
        %v542 = vmul.f32 %v177, %v537
        %v543 = vmul.f32 %v178, %v537
        %v544 = vmul.f32 %v179, %v537
        %v545 = vmul.f32 %v180, %v537
        %v546 = vmul.f32 %v181, %v537
        %v547 = vmul.f32 %v182, %v537
        %v548 = vmul.f32 %v183, %v537
        %v549 = vmul.f32 %v184, %v537
        %v550 = vmul.f32 %v185, %v537
        %v551 = vmul.f32 %v186, %v537
        %v552 = vmul.f32 %v187, %v537
        %v553 = vmul.f32 %v188, %v537
        %v570 = vrot.slane %v538, 1
        %v571 = vrot.slane %v539, 1
        %v572 = vsel %vm242, %v570, %v571
        %v573 = vrot.slane %v540, 1
        %v574 = vrot.slane %v541, 1
        %v575 = vsel %vm242, %v573, %v574
        %v576 = vrot.slane %v542, 1
        %v577 = vrot.slane %v543, 1
        %v578 = vsel %vm242, %v576, %v577
        %v579 = vrot.slane %v544, 1
        %v580 = vrot.slane %v545, 1
        %v581 = vsel %vm242, %v579, %v580
        %v582 = vrot.slane %v546, 1
        %v583 = vrot.slane %v547, 1
        %v584 = vsel %vm242, %v582, %v583
        %v585 = vrot.slane %v548, 1
        %v586 = vrot.slane %v549, 1
        %v587 = vsel %vm242, %v585, %v586
        %v588 = vrot.slane %v550, 1
        %v589 = vrot.slane %v551, 1
        %v590 = vsel %vm242, %v588, %v589
        %v591 = vrot.slane %v552, 1
        %v592 = vrot.slane %v553, 1
        %v593 = vsel %vm242, %v591, %v592
        %v602 = vadd.f32 %v529, %v572
        %v603 = vadd.f32 %v530, %v575
        %v604 = vadd.f32 %v531, %v578
        %v605 = vadd.f32 %v532, %v581
        %v606 = vadd.f32 %v533, %v584
        %v607 = vadd.f32 %v534, %v587
        %v608 = vadd.f32 %v535, %v590
        %v609 = vadd.f32 %v536, %v593
        %v610 = vperm.slane %v191, 2
        %v611 = vmul.f32 %v173, %v610
        %v612 = vmul.f32 %v174, %v610
        %v613 = vmul.f32 %v175, %v610
        %v614 = vmul.f32 %v176, %v610
        %v615 = vmul.f32 %v177, %v610
        %v616 = vmul.f32 %v178, %v610
        %v617 = vmul.f32 %v179, %v610
        %v618 = vmul.f32 %v180, %v610
        %v619 = vmul.f32 %v181, %v610
        %v620 = vmul.f32 %v182, %v610
        %v621 = vmul.f32 %v183, %v610
        %v622 = vmul.f32 %v184, %v610
        %v623 = vmul.f32 %v185, %v610
        %v624 = vmul.f32 %v186, %v610
        %v625 = vmul.f32 %v187, %v610
        %v626 = vmul.f32 %v188, %v610
        %v643 = vrot.slane %v611, 2
        %v644 = vrot.slane %v612, 2
        %v645 = vsel %vm316, %v643, %v644
        %v646 = vrot.slane %v613, 2
        %v647 = vrot.slane %v614, 2
        %v648 = vsel %vm316, %v646, %v647
        %v649 = vrot.slane %v615, 2
        %v650 = vrot.slane %v616, 2
        %v651 = vsel %vm316, %v649, %v650
        %v652 = vrot.slane %v617, 2
        %v653 = vrot.slane %v618, 2
        %v654 = vsel %vm316, %v652, %v653
        %v655 = vrot.slane %v619, 2
        %v656 = vrot.slane %v620, 2
        %v657 = vsel %vm316, %v655, %v656
        %v658 = vrot.slane %v621, 2
        %v659 = vrot.slane %v622, 2
        %v660 = vsel %vm316, %v658, %v659
        %v661 = vrot.slane %v623, 2
        %v662 = vrot.slane %v624, 2
        %v663 = vsel %vm316, %v661, %v662
        %v664 = vrot.slane %v625, 2
        %v665 = vrot.slane %v626, 2
        %v666 = vsel %vm316, %v664, %v665
        %v675 = vadd.f32 %v602, %v645
        %v676 = vadd.f32 %v603, %v648
        %v677 = vadd.f32 %v604, %v651
        %v678 = vadd.f32 %v605, %v654
        %v679 = vadd.f32 %v606, %v657
        %v680 = vadd.f32 %v607, %v660
        %v681 = vadd.f32 %v608, %v663
        %v682 = vadd.f32 %v609, %v666
        %v683 = vld [vmem:[%s2] sm:$0x1]
        %v685 = vperm.slane %v683, 0
        %v687 = vadd.f32 %v675, %v685
        %v688 = vadd.f32 %v676, %v685
        %v689 = vadd.f32 %v677, %v685
        %v690 = vadd.f32 %v678, %v685
        %v691 = vadd.f32 %v679, %v685
        %v692 = vadd.f32 %v680, %v685
        %v693 = vadd.f32 %v681, %v685
        %v694 = vadd.f32 %v682, %v685
        %vm695 = vcmask 261120
        %696 = vst.msk [vmem:[%s163] sm:$0xff] %vm695, %v687
        %697 = vst.msk [vmem:[%s163 + $0x8] sm:$0xff] %vm695, %v688
        %698 = vst.msk [vmem:[%s163 + $0x10] sm:$0xff] %vm695, %v689
        %699 = vst.msk [vmem:[%s163 + $0x18] sm:$0xff] %vm695, %v690
        %700 = vst.msk [vmem:[%s163 + $0x20] sm:$0xff] %vm695, %v691
        %701 = vst.msk [vmem:[%s163 + $0x28] sm:$0xff] %vm695, %v692
        %702 = vst.msk [vmem:[%s163 + $0x30] sm:$0xff] %vm695, %v693
        %703 = vst.msk [vmem:[%s163 + $0x38] sm:$0xff] %vm695, %v694
        %s704 = sand.u32 %s93, 1
        %s705 = scalar_lea.sflag [#allocation3], %s704
        %s706 = sand.u32 %s93, 1
        %s707 = smul.addr %s706, 64
        %s708 = scalar_lea.vmem [#allocation2], %s707
        // Predicated region
        $region33: #{tpu_custom_call.1} parent=31 // pred_check
          %p709 = pneg %p103
        $region34: #{tpu_custom_call.1} parent=31 // pred_check_branch
          %711 = sbr.rel (%p709) target = $region36
        $region35: #{tpu_custom_call.1} parent=31 // pred_region
          %713 = vsyncadd %s705, 0
          %s714 = smul.addr %s17, 8
          %s715 = smul.addr %s714, 8
          %s716 = scalar_lea.hbm %s3, %s715
          %s717 = sshll.u32 %s708, 4
          %s718 = int_to_ptr.vmem [resolvable:$true] %s717
          %s719 = sshll.u32 %s716, 4
          %s720 = int_to_ptr.hbm [resolvable:$true] %s719
          %725 = dma.vmem_to_hbm [thread:$0]  %s718, 1024, %s720, %s705, 128, 128, 8
        $region36: #{tpu_custom_call.1} parent=31 // pred_fallthru
          _
      $region32: #{tpu_custom_call.1} parent=5 // pred_fallthru
        _
      %p726 = scmp.le.s32.totalorder 2, %s12
      // Predicated region
      $region37: #{tpu_custom_call.1} parent=5 // pred_check
        %p727 = pneg %p726
      $region38: #{tpu_custom_call.1} parent=5 // pred_check_branch
        %729 = sbr.rel (%p727) target = $region40
      $region39: #{tpu_custom_call.1} parent=5 // pred_region
        %s730 = ssub.s32 %s12, 2
        // Predicated region
        $region41: #{tpu_custom_call.1} parent=39 // pred_check
          %p731 = pneg %p109
        $region42: #{tpu_custom_call.1} parent=39 // pred_check_branch
          %733 = sbr.rel (%p731) target = $region44
        $region43: #{tpu_custom_call.1} parent=39 // pred_region
          %s734 = sand.u32 %s94, 1
          %s735 = scalar_lea.sflag [#allocation3], %s734
          %s736 = sand.u32 %s94, 1
          %s737 = smul.addr %s736, 64
          %s738 = scalar_lea.vmem [#allocation2], %s737
          %740 = dma.done %s735, 1024
        $region44: #{tpu_custom_call.1} parent=39 // pred_fallthru
          _
      $region40: #{tpu_custom_call.1} parent=5 // pred_fallthru
        _
    $region6: #{tpu_custom_call.1} parent=1 // loop_footer
      %s16 = sadd.s32 1, %s12
    $region7: #{tpu_custom_call.1} parent=1 // loop_footer_branch
      %11 = sbr.rel target = $region3
    $region8: #{tpu_custom_call.1} parent=1 // loop_exit
      _
    %741 = vsyncpa [#allocation3], 1
    %s742 = scalar_lea.sflag [#allocation3], 1
    %743 = vsyncpa %s742, 1

</llo_original>
